<compile_context>
chip_gen: v7x
topology: tpu7x:2x2x1
jax: 0.10.0
libtpu: 0.0.40
codegen_flags: <defaults>
</compile_context>

<pallas_src>
import functools

import jax
import jax.numpy as jnp
from jax.experimental import pallas as pl
from jax.experimental.pallas import tpu as pltpu

LANE = 128
SUBLANE = 8  # x / output refs are f32


def _round_up(x, m):
    return ((x + m - 1) // m) * m


def _device_kind():
    try:
        return jax.devices()[0].device_kind.lower()
    except Exception:
        return ""


def _num_tensorcores():
    # v7x has 2 TensorCores per chip; v5e/v6e have 1.
    return 2 if "v7" in _device_kind() else 1


def _default_compute_dtype():
    # bf16-native MXUs on v6e/v7x; keep exact f32 elsewhere / when unknown.
    kind = _device_kind()
    return jnp.bfloat16 if ("v6" in kind or "v7" in kind) else jnp.float32


# ---------------------------------------------------------------------------
# Kernel
# ---------------------------------------------------------------------------
def qnetwork_kernel(x_ref, w1_ref, b1_ref, w2_ref, b2_ref, w3_ref, b3_ref, o_ref):
    """Fused 3-layer MLP: relu(relu(x@W1+b1)@W2+b2)@W3+b3.

    MXU operands use the weights' dtype (f32 or bf16); accumulation and all
    elementwise math (bias add, ReLU) stay f32.  Hidden dims are pre-padded to
    128 lanes; only the first n_actions lanes of the result are stored.
    """
    cdt = w1_ref.dtype
    x = x_ref[...].astype(cdt)
    h1 = jnp.dot(x, w1_ref[...], preferred_element_type=jnp.float32) + b1_ref[...]
    h1 = jnp.maximum(h1, 0.0)
    h2 = jnp.dot(h1.astype(cdt), w2_ref[...],
                 preferred_element_type=jnp.float32) + b2_ref[...]
    h2 = jnp.maximum(h2, 0.0)
    q = jnp.dot(h2.astype(cdt), w3_ref[...],
                preferred_element_type=jnp.float32) + b3_ref[...]
    # Compact writeback: only the real action columns go to HBM.
    o_ref[...] = q[:, : o_ref.shape[1]].astype(o_ref.dtype)


# ---------------------------------------------------------------------------
# One-time parameter preparation (padding + compute-dtype cast)
# ---------------------------------------------------------------------------
def prepare_params(params, compute_dtype=None):
    """Pad all feature dims to 128 lanes (zeros -> exact) and cast weights once."""
    if compute_dtype is None:
        compute_dtype = _default_compute_dtype()
    cdt = jnp.dtype(compute_dtype)

    w1, b1 = params["w1"], params["b1"]
    w2, b2 = params["w2"], params["b2"]
    w3, b3 = params["w3"], params["b3"]
    h1, h2, n_act = w1.shape[1], w2.shape[1], w3.shape[1]
    h1p, h2p, nap = _round_up(h1, LANE), _round_up(h2, LANE), _round_up(n_act, LANE)

    return {
        "w1": jnp.pad(w1, ((0, 0), (0, h1p - h1))).astype(cdt),
        "b1": jnp.pad(b1, ((0, 0), (0, h1p - h1))).astype(jnp.float32),
        "w2": jnp.pad(w2, ((0, h1p - h1), (0, h2p - h2))).astype(cdt),
        "b2": jnp.pad(b2, ((0, 0), (0, h2p - h2))).astype(jnp.float32),
        "w3": jnp.pad(w3, ((0, h2p - h2), (0, nap - n_act))).astype(cdt),
        "b3": jnp.pad(b3, ((0, 0), (0, nap - n_act))).astype(jnp.float32),
    }


# ---------------------------------------------------------------------------
# Forward
# ---------------------------------------------------------------------------
@functools.partial(jax.jit, static_argnames=("n_actions", "block_b", "num_tc"))
def _qnetwork_forward_impl(x, prep, *, n_actions, block_b, num_tc):
    w1p, b1p = prep["w1"], prep["b1"]
    w2p, b2p = prep["w2"], prep["b2"]
    w3p, b3p = prep["w3"], prep["b3"]

    B, in_dim = x.shape
    h1p, h2p, nap = w1p.shape[1], w2p.shape[1], w3p.shape[1]

    # Batch tiling: big tiles amortize per-step overhead; on 2-TC chips (v7x)
    # split so the "parallel" grid axis has >= num_tc points.
    B_al = _round_up(B, SUBLANE)
    bb = min(block_b, B_al)
    if num_tc > 1:
        bb = min(bb, _round_up(-(-B_al // num_tc), SUBLANE))
    bb = _round_up(bb, SUBLANE)
    B_pad = _round_up(B, bb)
    if B_pad != B:
        x = jnp.pad(x, ((0, B_pad - B), (0, 0)))   # x stays f32 (cast in-kernel)

    grid = (B_pad // bb,)
    full = lambda shape: pl.BlockSpec(shape, lambda i: (0, 0))  # resident weights

    flops = 2 * B_pad * (in_dim * h1p + h1p * h2p + h2p * nap)
    bytes_accessed = int(
        B_pad * in_dim * x.dtype.itemsize
        + sum(a.size * a.dtype.itemsize for a in (w1p, b1p, w2p, b2p, w3p, b3p))
        + B_pad * n_actions * 4
    )

    out = pl.pallas_call(
        qnetwork_kernel,
        out_shape=jax.ShapeDtypeStruct((B_pad, n_actions), jnp.float32),
        grid_spec=pltpu.PrefetchScalarGridSpec(
            num_scalar_prefetch=0,
            grid=grid,
            in_specs=[
                pl.BlockSpec((bb, in_dim), lambda i: (i, 0)),   # x tile
                full((in_dim, h1p)), full((1, h1p)),            # layer 1
                full((h1p, h2p)),    full((1, h2p)),            # layer 2
                full((h2p, nap)),    full((1, nap)),            # layer 3
            ],
            out_specs=pl.BlockSpec((bb, n_actions), lambda i: (i, 0)),
        ),
        compiler_params=pltpu.CompilerParams(
            dimension_semantics=("parallel",),
        ),
        cost_estimate=pl.CostEstimate(
            flops=flops, transcendentals=0, bytes_accessed=bytes_accessed),
    )(x, w1p, b1p, w2p, b2p, w3p, b3p)

    return out[:B]


def qnetwork_forward(x, prepared_params, n_actions, block_b=1024):
    """x: (B, obs_dim+enc) f32. prepared_params: output of prepare_params()."""
    return _qnetwork_forward_impl(
        x, prepared_params, n_actions=n_actions, block_b=block_b,
        num_tc=_num_tensorcores())


# ---------------------------------------------------------------------------
# Init + pure-JAX reference
# ---------------------------------------------------------------------------
def init_qnetwork_params(key, obs_dim, n_actions, encoder_output_size=0):
    """nn.Linear-style init U(-1/sqrt(fan_in), 1/sqrt(fan_in)); weights stored (in, out)."""
    in_dim = obs_dim + encoder_output_size
    dims = [(in_dim, 120), (120, 84), (84, n_actions)]
    params = {}
    for li, (fi, fo) in enumerate(dims, start=1):
        key, kw, kb = jax.random.split(key, 3)
        bound = 1.0 / jnp.sqrt(jnp.float32(fi))
        params[f"w{li}"] = jax.random.uniform(
            kw, (fi, fo), jnp.float32, minval=-bound, maxval=bound)
        params[f"b{li}"] = jax.random.uniform(
            kb, (1, fo), jnp.float32, minval=-bound, maxval=bound)
    return params


def qnetwork_reference(x, params):
    h = jnp.maximum(x @ params["w1"] + params["b1"], 0.0)
    h = jnp.maximum(h @ params["w2"] + params["b2"], 0.0)
    return h @ params["w3"] + params["b3"]


if __name__ == "__main__":
    key = jax.random.PRNGKey(0)
    k_x, k_p = jax.random.split(key)

    # Small shapes consistent with the module: flattened obs dim 8,
    # encoder_output_size=0, 4 discrete actions, batch of 2.
    batch, obs_dim, n_actions = 2, 8, 4
    x = jax.random.normal(k_x, (batch, obs_dim), jnp.float32)
    params = init_qnetwork_params(k_p, obs_dim, n_actions, encoder_output_size=0)
    ref = qnetwork_reference(x, params)

    # Exact f32 path (one-time param prep, re-used across calls).
    prep_f32 = prepare_params(params, compute_dtype=jnp.float32)
    out = jax.block_until_ready(qnetwork_forward(x, prep_f32, n_actions))
    assert out.shape == (batch, n_actions)
    assert jnp.allclose(out, ref, atol=1e-5, rtol=1e-5), "f32 small-batch mismatch"

    # Larger batch: exercises batch tiling (and 2-way grid split on v7x).
    xb = jax.random.normal(jax.random.PRNGKey(1), (1024, obs_dim), jnp.float32)
    ref_b = qnetwork_reference(xb, params)
    out_f32 = jax.block_until_ready(qnetwork_forward(xb, prep_f32, n_actions))
    assert out_f32.shape == (1024, n_actions)
    assert jnp.allclose(out_f32, ref_b, atol=1e-5, rtol=1e-5), "f32 large-batch mismatch"

    # Chip-default compute dtype: bf16 MXU operands on v6e/v7x (f32 accumulation),
    # f32 elsewhere. Tolerance chosen to match the selected path.
    prep_def = prepare_params(params)
    out_def = jax.block_until_ready(qnetwork_forward(xb, prep_def, n_actions))
    if prep_def["w1"].dtype == jnp.bfloat16:
        assert jnp.allclose(out_def, ref_b, atol=5e-2, rtol=5e-2), "bf16 mismatch"
    else:
        assert jnp.allclose(out_def, ref_b, atol=1e-5, rtol=1e-5), "default-path mismatch"

    print("KERNEL_OK")
</pallas_src>

<mosaic_0001>
module attributes {stable_mosaic.version = 11 : i64} {
  func.func @qnetwork_kernel(%arg0: i32, %arg1: memref<8x8xf32, #tpu.memory_space<vmem>>, %arg2: memref<8x128xf32, #tpu.memory_space<vmem>>, %arg3: memref<1x128xf32, #tpu.memory_space<vmem>>, %arg4: memref<128x128xf32, #tpu.memory_space<vmem>>, %arg5: memref<1x128xf32, #tpu.memory_space<vmem>>, %arg6: memref<128x128xf32, #tpu.memory_space<vmem>>, %arg7: memref<1x128xf32, #tpu.memory_space<vmem>>, %arg8: memref<8x4xf32, #tpu.memory_space<vmem>>) attributes {dimension_semantics = [#tpu.dimension_semantics<parallel>], iteration_bounds = array<i64: 1>, scalar_prefetch = 0 : i64, scratch_operands = 0 : i64, tpu.core_type = #tpu.core_type<tc>, window_params = [{transform_indices = @transform_0, window_bounds = array<i64: 8, 8>}, {pipeline_mode = #tpu.pipeline_mode<synchronous>, transform_indices = @transform_1, window_bounds = array<i64: 8, 128>}, {pipeline_mode = #tpu.pipeline_mode<synchronous>, transform_indices = @transform_2, window_bounds = array<i64: 1, 128>}, {pipeline_mode = #tpu.pipeline_mode<synchronous>, transform_indices = @transform_3, window_bounds = array<i64: 128, 128>}, {pipeline_mode = #tpu.pipeline_mode<synchronous>, transform_indices = @transform_4, window_bounds = array<i64: 1, 128>}, {pipeline_mode = #tpu.pipeline_mode<synchronous>, transform_indices = @transform_5, window_bounds = array<i64: 128, 128>}, {pipeline_mode = #tpu.pipeline_mode<synchronous>, transform_indices = @transform_6, window_bounds = array<i64: 1, 128>}, {transform_indices = @transform_7, window_bounds = array<i64: 8, 4>}]} {
    %c0 = arith.constant 0 : index
    %c0_0 = arith.constant 0 : index
    %0 = vector.load %arg1[%c0, %c0_0] : memref<8x8xf32, #tpu.memory_space<vmem>>, vector<8x8xf32>
    %c0_1 = arith.constant 0 : index
    %c0_2 = arith.constant 0 : index
    %1 = vector.load %arg2[%c0_1, %c0_2] : memref<8x128xf32, #tpu.memory_space<vmem>>, vector<8x128xf32>
    %cst = arith.constant dense<0.000000e+00> : vector<8x128xf32>
    %2 = tpu.matmul %0, %1, %cst {dimension_numbers = #tpu.dot_dimension_numbers<[1], [0], [0], [1], [0, 0, 1, 1], [], []>} : vector<8x8xf32>, vector<8x128xf32>, vector<8x128xf32> -> vector<8x128xf32>
    %c0_3 = arith.constant 0 : index
    %c0_4 = arith.constant 0 : index
    %3 = vector.load %arg3[%c0_3, %c0_4] : memref<1x128xf32, #tpu.memory_space<vmem>>, vector<1x128xf32>
    %4 = vector.broadcast %3 : vector<1x128xf32> to vector<8x128xf32>
    %5 = arith.addf %2, %4 : vector<8x128xf32>
    %cst_5 = arith.constant 0.000000e+00 : f32
    %6 = vector.broadcast %cst_5 : f32 to vector<8x128xf32>
    %7 = arith.maximumf %5, %6 : vector<8x128xf32>
    %c0_6 = arith.constant 0 : index
    %c0_7 = arith.constant 0 : index
    %8 = vector.load %arg4[%c0_6, %c0_7] : memref<128x128xf32, #tpu.memory_space<vmem>>, vector<128x128xf32>
    %cst_8 = arith.constant dense<0.000000e+00> : vector<8x128xf32>
    %9 = tpu.matmul %7, %8, %cst_8 {dimension_numbers = #tpu.dot_dimension_numbers<[1], [0], [0], [1], [0, 0, 1, 1], [], []>} : vector<8x128xf32>, vector<128x128xf32>, vector<8x128xf32> -> vector<8x128xf32>
    %c0_9 = arith.constant 0 : index
    %c0_10 = arith.constant 0 : index
    %10 = vector.load %arg5[%c0_9, %c0_10] : memref<1x128xf32, #tpu.memory_space<vmem>>, vector<1x128xf32>
    %11 = vector.broadcast %10 : vector<1x128xf32> to vector<8x128xf32>
    %12 = arith.addf %9, %11 : vector<8x128xf32>
    %cst_11 = arith.constant 0.000000e+00 : f32
    %13 = vector.broadcast %cst_11 : f32 to vector<8x128xf32>
    %14 = arith.maximumf %12, %13 : vector<8x128xf32>
    %c0_12 = arith.constant 0 : index
    %c0_13 = arith.constant 0 : index
    %15 = vector.load %arg6[%c0_12, %c0_13] : memref<128x128xf32, #tpu.memory_space<vmem>>, vector<128x128xf32>
    %cst_14 = arith.constant dense<0.000000e+00> : vector<8x128xf32>
    %16 = tpu.matmul %14, %15, %cst_14 {dimension_numbers = #tpu.dot_dimension_numbers<[1], [0], [0], [1], [0, 0, 1, 1], [], []>} : vector<8x128xf32>, vector<128x128xf32>, vector<8x128xf32> -> vector<8x128xf32>
    %c0_15 = arith.constant 0 : index
    %c0_16 = arith.constant 0 : index
    %17 = vector.load %arg7[%c0_15, %c0_16] : memref<1x128xf32, #tpu.memory_space<vmem>>, vector<1x128xf32>
    %18 = vector.broadcast %17 : vector<1x128xf32> to vector<8x128xf32>
    %19 = arith.addf %16, %18 : vector<8x128xf32>
    %20 = vector.extract_strided_slice %19 {offsets = [0, 0], sizes = [8, 4], strides = [1, 1]} : vector<8x128xf32> to vector<8x4xf32>
    %c0_17 = arith.constant 0 : index
    %c0_18 = arith.constant 0 : index
    %21 = vector.load %arg8[%c0_17, %c0_18] : memref<8x4xf32, #tpu.memory_space<vmem>>, vector<8x4xf32>
    tpu.vector_store %arg8[%c0_17, %c0_18], %20 {strides = array<i32>} : memref<8x4xf32, #tpu.memory_space<vmem>>, vector<8x4xf32>,
    return
  }
  func.func @transform_0(%arg0: i32) -> (i32, i32) {
    %c0_i32 = arith.constant 0 : i32
    %c0_i32_0 = arith.constant 0 : i32
    return %arg0, %c0_i32 : i32, i32
  }
  func.func @transform_1(%arg0: i32) -> (i32, i32) {
    %c0_i32 = arith.constant 0 : i32
    %c0_i32_0 = arith.constant 0 : i32
    %c0_i32_1 = arith.constant 0 : i32
    return %c0_i32, %c0_i32_0 : i32, i32
  }
  func.func @transform_2(%arg0: i32) -> (i32, i32) {
    %c0_i32 = arith.constant 0 : i32
    %c0_i32_0 = arith.constant 0 : i32
    %c0_i32_1 = arith.constant 0 : i32
    return %c0_i32, %c0_i32_0 : i32, i32
  }
  func.func @transform_3(%arg0: i32) -> (i32, i32) {
    %c0_i32 = arith.constant 0 : i32
    %c0_i32_0 = arith.constant 0 : i32
    %c0_i32_1 = arith.constant 0 : i32
    return %c0_i32, %c0_i32_0 : i32, i32
  }
  func.func @transform_4(%arg0: i32) -> (i32, i32) {
    %c0_i32 = arith.constant 0 : i32
    %c0_i32_0 = arith.constant 0 : i32
    %c0_i32_1 = arith.constant 0 : i32
    return %c0_i32, %c0_i32_0 : i32, i32
  }
  func.func @transform_5(%arg0: i32) -> (i32, i32) {
    %c0_i32 = arith.constant 0 : i32
    %c0_i32_0 = arith.constant 0 : i32
    %c0_i32_1 = arith.constant 0 : i32
    return %c0_i32, %c0_i32_0 : i32, i32
  }
  func.func @transform_6(%arg0: i32) -> (i32, i32) {
    %c0_i32 = arith.constant 0 : i32
    %c0_i32_0 = arith.constant 0 : i32
    %c0_i32_1 = arith.constant 0 : i32
    return %c0_i32, %c0_i32_0 : i32, i32
  }
  func.func @transform_7(%arg0: i32) -> (i32, i32) {
    %c0_i32 = arith.constant 0 : i32
    %c0_i32_0 = arith.constant 0 : i32
    return %arg0, %c0_i32 : i32, i32
  }
}

</mosaic_0001>

<llo_original>
// kernel: _qnetwork_forward_impl.1
$region0: #{_qnetwork_forward_impl.1}
  #allocation0 [shape = 'u32[]', space=smem, size = 0x4, offset = 0x4, fixed_abs, tag = 'smem constant byte address 0x4 - core index']
  #allocation1 [shape = 'u32[144,128]{1,0:T(1,128)}', space=vmem, size = 0x12000, scoped, tag = 'internal scratch']
  %s0 = inlined_call_operand.vmem [shape: f32[8,8], index: 0, kind: input, shape index: {}]
  %s1 = inlined_call_operand.vmem [shape: f32[8,128], index: 1, kind: input, shape index: {}]
  %s2 = inlined_call_operand.vmem [shape: f32[1,128], index: 2, kind: input, shape index: {}]
  %s3 = inlined_call_operand.hbm [shape: f32[128,128], index: 3, kind: input, shape index: {}]
  %s4 = inlined_call_operand.vmem [shape: f32[1,128], index: 4, kind: input, shape index: {}]
  %s5 = inlined_call_operand.hbm [shape: f32[128,128], index: 5, kind: input, shape index: {}]
  %s6 = inlined_call_operand.vmem [shape: f32[1,128], index: 6, kind: input, shape index: {}]
  %s7 = inlined_call_operand.vmem [shape: f32[8,4], index: 7, kind: output, shape index: {}]
  %s8 = sld [smem:[#allocation0]]
  $region46: #{_qnetwork_forward_impl.1} parent=0
    _
  %s10 = ssub.s32 1, %s8
  %s11 = scalar_select 0, %s10, %s8
  $region1: #{_qnetwork_forward_impl.1} parent=0
    #allocation2 [shape = 'u8[65536]{0}', space=vmem, size = 0x10000, scoped, tag = 'input window, operand 3, single buffered']
    #allocation3 [shape = 's32[1]{0}', space=sflag, size = 0x4, scoped, tag = 'scoped memory for _qnetwork_forward_impl.1']
    #allocation4 [shape = 'u8[65536]{0}', space=vmem, size = 0x10000, scoped, tag = 'input window, operand 5, single buffered']
    #allocation5 [shape = 's32[1]{0}', space=sflag, size = 0x4, scoped, tag = 'scoped memory for _qnetwork_forward_impl.1']
    %12 = vsyncpa [#allocation3], 0
    %13 = vsyncpa [#allocation5], 0
    // Predicated region
    $region2: #{_qnetwork_forward_impl.1} parent=1 // pred_check
      _
    $region3: #{_qnetwork_forward_impl.1} parent=1 // pred_check_branch
      %15 = sbr.rel (0) target = $region5
    $region4: #{_qnetwork_forward_impl.1} parent=1 // pred_region
      _
    $region5: #{_qnetwork_forward_impl.1} parent=1 // pred_fallthru
      _
    // Predicated region
    $region6: #{_qnetwork_forward_impl.1} parent=1 // pred_check
      _
    $region7: #{_qnetwork_forward_impl.1} parent=1 // pred_check_branch
      %17 = sbr.rel (0) target = $region9
    $region8: #{_qnetwork_forward_impl.1} parent=1 // pred_region
      _
    $region9: #{_qnetwork_forward_impl.1} parent=1 // pred_fallthru
      _
    // Predicated region
    $region10: #{_qnetwork_forward_impl.1} parent=1 // pred_check
      _
    $region11: #{_qnetwork_forward_impl.1} parent=1 // pred_check_branch
      %19 = sbr.rel (0) target = $region13
    $region12: #{_qnetwork_forward_impl.1} parent=1 // pred_region
      _
    $region13: #{_qnetwork_forward_impl.1} parent=1 // pred_fallthru
      _
    // Predicated region
    $region14: #{_qnetwork_forward_impl.1} parent=1 // pred_check
      _
    $region15: #{_qnetwork_forward_impl.1} parent=1 // pred_check_branch
      %21 = sbr.rel (0) target = $region17
    $region16: #{_qnetwork_forward_impl.1} parent=1 // pred_region
      %s23 = ssub.s32 2048, 2048
      %24 = vsyncadd [#allocation3], %s23
      %s25 = sshll.u32 [#allocation2], 4
      %s26 = int_to_ptr.vmem [resolvable:$true] %s25
      %31 = dma.hbm_to_vmem [thread:$0]  %s3, 2048, %s26, [#allocation3], 128, 128, 8
    $region17: #{_qnetwork_forward_impl.1} parent=1 // pred_fallthru
      _
    // Predicated region
    $region18: #{_qnetwork_forward_impl.1} parent=1 // pred_check
      _
    $region19: #{_qnetwork_forward_impl.1} parent=1 // pred_check_branch
      %33 = sbr.rel (0) target = $region21
    $region20: #{_qnetwork_forward_impl.1} parent=1 // pred_region
      _
    $region21: #{_qnetwork_forward_impl.1} parent=1 // pred_fallthru
      _
    // Predicated region
    $region22: #{_qnetwork_forward_impl.1} parent=1 // pred_check
      _
    $region23: #{_qnetwork_forward_impl.1} parent=1 // pred_check_branch
      %35 = sbr.rel (0) target = $region25
    $region24: #{_qnetwork_forward_impl.1} parent=1 // pred_region
      %s37 = ssub.s32 2048, 2048
      %38 = vsyncadd [#allocation5], %s37
      %s39 = sshll.u32 [#allocation4], 4
      %s40 = int_to_ptr.vmem [resolvable:$true] %s39
      %45 = dma.hbm_to_vmem [thread:$0]  %s5, 2048, %s40, [#allocation5], 128, 128, 8
    $region25: #{_qnetwork_forward_impl.1} parent=1 // pred_fallthru
      _
    // Predicated region
    $region26: #{_qnetwork_forward_impl.1} parent=1 // pred_check
      _
    $region27: #{_qnetwork_forward_impl.1} parent=1 // pred_check_branch
      %47 = sbr.rel (0) target = $region29
    $region28: #{_qnetwork_forward_impl.1} parent=1 // pred_region
      _
    $region29: #{_qnetwork_forward_impl.1} parent=1 // pred_fallthru
      _
    // Predicated region
    $region30: #{_qnetwork_forward_impl.1} parent=1 // pred_check
      _
    $region31: #{_qnetwork_forward_impl.1} parent=1 // pred_check_branch
      %49 = sbr.rel (0) target = $region33
    $region32: #{_qnetwork_forward_impl.1} parent=1 // pred_region
      %50 = dma.done [#allocation3], 2048
    $region33: #{_qnetwork_forward_impl.1} parent=1 // pred_fallthru
      _
    // Predicated region
    $region34: #{_qnetwork_forward_impl.1} parent=1 // pred_check
      _
    $region35: #{_qnetwork_forward_impl.1} parent=1 // pred_check_branch
      %52 = sbr.rel (0) target = $region37
    $region36: #{_qnetwork_forward_impl.1} parent=1 // pred_region
      %53 = dma.done [#allocation5], 2048
    $region37: #{_qnetwork_forward_impl.1} parent=1 // pred_fallthru
      _
    %v54 = vld [vmem:[%s0] sm:$0xff]
    %v55 = vld [vmem:[%s1] sm:$0xff]
    %v56 = vld [vmem:[%s2] sm:$0x1]
    %v58 = vlaneseq
    %v59 = vshrl.u32 %v58, 7
    %v60 = vsub.s32 0, %v59
    %v61 = vrot.slane %v56, %v60
    %vm63 = vcmask 64512
    %v65 = vsel %vm63, %v54, 0
    %67 = vmatprep.subr.mxu0 0.0
    %68 = vmatpush1.msra.mxu0 %v55
    %69 = vmatprep.subr.mxu0 0.0
    %70 = vmatpush1.msra.mxu0 0.0
    %71 = vmatprep.subr.mxu0 0.0
    %72 = vmatpush1.msra.mxu0 0.0
    %73 = vmatprep.subr.mxu0 0.0
    %74 = vmatpush1.msra.mxu0 0.0
    %75 = vmatprep.subr.mxu0 0.0
    %76 = vmatpush1.msra.mxu0 0.0
    %77 = vmatprep.subr.mxu0 0.0
    %78 = vmatpush1.msra.mxu0 0.0
    %79 = vmatprep.subr.mxu0 0.0
    %80 = vmatpush1.msra.mxu0 0.0
    %81 = vmatprep.subr.mxu0 0.0
    %82 = vmatpush1.msra.mxu0 0.0
    %83 = vmatprep.subr.mxu0 0.0
    %84 = vmatpush1.msra.mxu0 0.0
    %85 = vmatprep.subr.mxu0 0.0
    %86 = vmatpush1.msra.mxu0 0.0
    %87 = vmatprep.subr.mxu0 0.0
    %88 = vmatpush1.msra.mxu0 0.0
    %89 = vmatprep.subr.mxu0 0.0
    %90 = vmatpush1.msra.mxu0 0.0
    %91 = vmatprep.subr.mxu0 0.0
    %92 = vmatpush1.msra.mxu0 0.0
    %93 = vmatprep.subr.mxu0 0.0
    %94 = vmatpush1.msra.mxu0 0.0
    %95 = vmatprep.subr.mxu0 0.0
    %96 = vmatpush1.msra.mxu0 0.0
    %97 = vmatprep.subr.mxu0 0.0
    %98 = vmatpush1.msra.mxu0 0.0
    %99 = vmatprep.subr.mxu0 0.0
    %100 = vmatpush1.msra.mxu0 0.0
    %101 = vmatprep.subr.mxu0 0.0
    %102 = vmatpush1.msra.mxu0 0.0
    %103 = vmatprep.subr.mxu0 0.0
    %104 = vmatpush1.msra.mxu0 0.0
    %105 = vmatprep.subr.mxu0 0.0
    %106 = vmatpush1.msra.mxu0 0.0
    %107 = vmatprep.subr.mxu0 0.0
    %108 = vmatpush1.msra.mxu0 0.0
    %109 = vmatprep.subr.mxu0 0.0
    %110 = vmatpush1.msra.mxu0 0.0
    %111 = vmatprep.subr.mxu0 0.0
    %112 = vmatpush1.msra.mxu0 0.0
    %113 = vmatprep.subr.mxu0 0.0
    %114 = vmatpush1.msra.mxu0 0.0
    %115 = vmatprep.subr.mxu0 0.0
    %116 = vmatpush1.msra.mxu0 0.0
    %117 = vmatprep.subr.mxu0 0.0
    %118 = vmatpush1.msra.mxu0 0.0
    %119 = vmatprep.subr.mxu0 0.0
    %120 = vmatpush1.msra.mxu0 0.0
    %121 = vmatprep.subr.mxu0 0.0
    %122 = vmatpush1.msra.mxu0 0.0
    %123 = vmatprep.subr.mxu0 0.0
    %124 = vmatpush1.msra.mxu0 0.0
    %125 = vmatprep.subr.mxu0 0.0
    %126 = vmatpush1.msra.mxu0 0.0
    %127 = vmatprep.subr.mxu0 0.0
    %128 = vmatpush1.msra.mxu0 0.0
    %129 = vmatprep.subr.mxu0 0.0
    %130 = vmatpush1.msra.mxu0 0.0
    %131 = vmatprep.mubr.f32.mxu0 0.0
    %132 = vmatmul.mubr.f32.gmra.mrb[0].mxu0 %v65
    %v133 = vpop.f32.mrb[0].mxu0
    %v134 = vadd.f32 %v61, %v133
    %v135 = vpop.f32.mrb[0].mxu0
    %136 = vdwg.mxu0
    %v137 = vmax.f32 %v134, 0.0
    %v138 = vld [vmem:[#allocation2] sm:$0xff]
    %v139 = vld [vmem:[#allocation2 + $0x8] sm:$0xff]
    %v140 = vld [vmem:[#allocation2 + $0x10] sm:$0xff]
    %v141 = vld [vmem:[#allocation2 + $0x18] sm:$0xff]
    %v142 = vld [vmem:[#allocation2 + $0x20] sm:$0xff]
    %v143 = vld [vmem:[#allocation2 + $0x28] sm:$0xff]
    %v144 = vld [vmem:[#allocation2 + $0x30] sm:$0xff]
    %v145 = vld [vmem:[#allocation2 + $0x38] sm:$0xff]
    %v146 = vld [vmem:[#allocation2 + $0x40] sm:$0xff]
    %v147 = vld [vmem:[#allocation2 + $0x48] sm:$0xff]
    %v148 = vld [vmem:[#allocation2 + $0x50] sm:$0xff]
    %v149 = vld [vmem:[#allocation2 + $0x58] sm:$0xff]
    %v150 = vld [vmem:[#allocation2 + $0x60] sm:$0xff]
    %v151 = vld [vmem:[#allocation2 + $0x68] sm:$0xff]
    %v152 = vld [vmem:[#allocation2 + $0x70] sm:$0xff]
    %v153 = vld [vmem:[#allocation2 + $0x78] sm:$0xff]
    %v154 = vld [vmem:[%s4] sm:$0x1]
    %v156 = vlaneseq
    %v157 = vshrl.u32 %v156, 7
    %v158 = vsub.s32 0, %v157
    %v159 = vrot.slane %v154, %v158
    %161 = vmatprep.subr.mxu0 0.0
    %162 = vmatpush1.msra.mxu0 %v138
    %163 = vmatprep.subr.mxu0 0.0
    %164 = vmatpush1.msra.mxu0 %v139
    %165 = vmatprep.subr.mxu0 0.0
    %166 = vmatpush1.msra.mxu0 %v140
    %167 = vmatprep.subr.mxu0 0.0
    %168 = vmatpush1.msra.mxu0 %v141
    %169 = vmatprep.subr.mxu0 0.0
    %170 = vmatpush1.msra.mxu0 %v142
    %171 = vmatprep.subr.mxu0 0.0
    %172 = vmatpush1.msra.mxu0 %v143
    %173 = vmatprep.subr.mxu0 0.0
    %174 = vmatpush1.msra.mxu0 %v144
    %175 = vmatprep.subr.mxu0 0.0
    %176 = vmatpush1.msra.mxu0 %v145
    %177 = vmatprep.subr.mxu0 0.0
    %178 = vmatpush1.msra.mxu0 %v146
    %179 = vmatprep.subr.mxu0 0.0
    %180 = vmatpush1.msra.mxu0 %v147
    %181 = vmatprep.subr.mxu0 0.0
    %182 = vmatpush1.msra.mxu0 %v148
    %183 = vmatprep.subr.mxu0 0.0
    %184 = vmatpush1.msra.mxu0 %v149
    %185 = vmatprep.subr.mxu0 0.0
    %186 = vmatpush1.msra.mxu0 %v150
    %187 = vmatprep.subr.mxu0 0.0
    %188 = vmatpush1.msra.mxu0 %v151
    %189 = vmatprep.subr.mxu0 0.0
    %190 = vmatpush1.msra.mxu0 %v152
    %191 = vmatprep.subr.mxu0 0.0
    %192 = vmatpush1.msra.mxu0 %v153
    %193 = vmatprep.subr.mxu0 0.0
    %194 = vmatpush1.msra.mxu0 0.0
    %195 = vmatprep.subr.mxu0 0.0
    %196 = vmatpush1.msra.mxu0 0.0
    %197 = vmatprep.subr.mxu0 0.0
    %198 = vmatpush1.msra.mxu0 0.0
    %199 = vmatprep.subr.mxu0 0.0
    %200 = vmatpush1.msra.mxu0 0.0
    %201 = vmatprep.subr.mxu0 0.0
    %202 = vmatpush1.msra.mxu0 0.0
    %203 = vmatprep.subr.mxu0 0.0
    %204 = vmatpush1.msra.mxu0 0.0
    %205 = vmatprep.subr.mxu0 0.0
    %206 = vmatpush1.msra.mxu0 0.0
    %207 = vmatprep.subr.mxu0 0.0
    %208 = vmatpush1.msra.mxu0 0.0
    %209 = vmatprep.subr.mxu0 0.0
    %210 = vmatpush1.msra.mxu0 0.0
    %211 = vmatprep.subr.mxu0 0.0
    %212 = vmatpush1.msra.mxu0 0.0
    %213 = vmatprep.subr.mxu0 0.0
    %214 = vmatpush1.msra.mxu0 0.0
    %215 = vmatprep.subr.mxu0 0.0
    %216 = vmatpush1.msra.mxu0 0.0
    %217 = vmatprep.subr.mxu0 0.0
    %218 = vmatpush1.msra.mxu0 0.0
    %219 = vmatprep.subr.mxu0 0.0
    %220 = vmatpush1.msra.mxu0 0.0
    %221 = vmatprep.subr.mxu0 0.0
    %222 = vmatpush1.msra.mxu0 0.0
    %223 = vmatprep.subr.mxu0 0.0
    %224 = vmatpush1.msra.mxu0 0.0
    %225 = vmatprep.mubr.f32.mxu0 0.0
    %226 = vmatmul.mubr.f32.gmra.mrb[0].mxu0 %v137
    %v227 = vpop.f32.mrb[0].mxu0
    %v228 = vadd.f32 %v159, %v227
    %v229 = vpop.f32.mrb[0].mxu0
    %230 = vdwg.mxu0
    %v231 = vmax.f32 %v228, 0.0
    %v232 = vld [vmem:[#allocation4] sm:$0xff]
    %v233 = vld [vmem:[#allocation4 + $0x8] sm:$0xff]
    %v234 = vld [vmem:[#allocation4 + $0x10] sm:$0xff]
    %v235 = vld [vmem:[#allocation4 + $0x18] sm:$0xff]
    %v236 = vld [vmem:[#allocation4 + $0x20] sm:$0xff]
    %v237 = vld [vmem:[#allocation4 + $0x28] sm:$0xff]
    %v238 = vld [vmem:[#allocation4 + $0x30] sm:$0xff]
    %v239 = vld [vmem:[#allocation4 + $0x38] sm:$0xff]
    %v240 = vld [vmem:[#allocation4 + $0x40] sm:$0xff]
    %v241 = vld [vmem:[#allocation4 + $0x48] sm:$0xff]
    %v242 = vld [vmem:[#allocation4 + $0x50] sm:$0xff]
    %v243 = vld [vmem:[#allocation4 + $0x58] sm:$0xff]
    %v244 = vld [vmem:[#allocation4 + $0x60] sm:$0xff]
    %v245 = vld [vmem:[#allocation4 + $0x68] sm:$0xff]
    %v246 = vld [vmem:[#allocation4 + $0x70] sm:$0xff]
    %v247 = vld [vmem:[#allocation4 + $0x78] sm:$0xff]
    %v248 = vld [vmem:[%s6] sm:$0x1]
    %v250 = vlaneseq
    %v251 = vshrl.u32 %v250, 7
    %v252 = vsub.s32 0, %v251
    %v253 = vrot.slane %v248, %v252
    %255 = vmatprep.subr.mxu0 0.0
    %256 = vmatpush1.msra.mxu0 %v232
    %257 = vmatprep.subr.mxu0 0.0
    %258 = vmatpush1.msra.mxu0 %v233
    %259 = vmatprep.subr.mxu0 0.0
    %260 = vmatpush1.msra.mxu0 %v234
    %261 = vmatprep.subr.mxu0 0.0
    %262 = vmatpush1.msra.mxu0 %v235
    %263 = vmatprep.subr.mxu0 0.0
    %264 = vmatpush1.msra.mxu0 %v236
    %265 = vmatprep.subr.mxu0 0.0
    %266 = vmatpush1.msra.mxu0 %v237
    %267 = vmatprep.subr.mxu0 0.0
    %268 = vmatpush1.msra.mxu0 %v238
    %269 = vmatprep.subr.mxu0 0.0
    %270 = vmatpush1.msra.mxu0 %v239
    %271 = vmatprep.subr.mxu0 0.0
    %272 = vmatpush1.msra.mxu0 %v240
    %273 = vmatprep.subr.mxu0 0.0
    %274 = vmatpush1.msra.mxu0 %v241
    %275 = vmatprep.subr.mxu0 0.0
    %276 = vmatpush1.msra.mxu0 %v242
    %277 = vmatprep.subr.mxu0 0.0
    %278 = vmatpush1.msra.mxu0 %v243
    %279 = vmatprep.subr.mxu0 0.0
    %280 = vmatpush1.msra.mxu0 %v244
    %281 = vmatprep.subr.mxu0 0.0
    %282 = vmatpush1.msra.mxu0 %v245
    %283 = vmatprep.subr.mxu0 0.0
    %284 = vmatpush1.msra.mxu0 %v246
    %285 = vmatprep.subr.mxu0 0.0
    %286 = vmatpush1.msra.mxu0 %v247
    %287 = vmatprep.subr.mxu0 0.0
    %288 = vmatpush1.msra.mxu0 0.0
    %289 = vmatprep.subr.mxu0 0.0
    %290 = vmatpush1.msra.mxu0 0.0
    %291 = vmatprep.subr.mxu0 0.0
    %292 = vmatpush1.msra.mxu0 0.0
    %293 = vmatprep.subr.mxu0 0.0
    %294 = vmatpush1.msra.mxu0 0.0
    %295 = vmatprep.subr.mxu0 0.0
    %296 = vmatpush1.msra.mxu0 0.0
    %297 = vmatprep.subr.mxu0 0.0
    %298 = vmatpush1.msra.mxu0 0.0
    %299 = vmatprep.subr.mxu0 0.0
    %300 = vmatpush1.msra.mxu0 0.0
    %301 = vmatprep.subr.mxu0 0.0
    %302 = vmatpush1.msra.mxu0 0.0
    %303 = vmatprep.subr.mxu0 0.0
    %304 = vmatpush1.msra.mxu0 0.0
    %305 = vmatprep.subr.mxu0 0.0
    %306 = vmatpush1.msra.mxu0 0.0
    %307 = vmatprep.subr.mxu0 0.0
    %308 = vmatpush1.msra.mxu0 0.0
    %309 = vmatprep.subr.mxu0 0.0
    %310 = vmatpush1.msra.mxu0 0.0
    %311 = vmatprep.subr.mxu0 0.0
    %312 = vmatpush1.msra.mxu0 0.0
    %313 = vmatprep.subr.mxu0 0.0
    %314 = vmatpush1.msra.mxu0 0.0
    %315 = vmatprep.subr.mxu0 0.0
    %316 = vmatpush1.msra.mxu0 0.0
    %317 = vmatprep.subr.mxu0 0.0
    %318 = vmatpush1.msra.mxu0 0.0
    %319 = vmatprep.mubr.f32.mxu0 0.0
    %320 = vmatmul.mubr.f32.gmra.mrb[0].mxu0 %v231
    %v321 = vpop.f32.mrb[0].mxu0
    %v322 = vadd.f32 %v253, %v321
    %v323 = vpop.f32.mrb[0].mxu0
    %324 = vdwg.mxu0
    %vm325 = vcmask 31744
    %326 = vst.msk [vmem:[%s7] sm:$0xff] %vm325, %v322
    // Predicated region
    $region38: #{_qnetwork_forward_impl.1} parent=1 // pred_check
      _
    $region39: #{_qnetwork_forward_impl.1} parent=1 // pred_check_branch
      %328 = sbr.rel (0) target = $region41
    $region40: #{_qnetwork_forward_impl.1} parent=1 // pred_region
      _
    $region41: #{_qnetwork_forward_impl.1} parent=1 // pred_fallthru
      _
    // Predicated region
    $region42: #{_qnetwork_forward_impl.1} parent=1 // pred_check
      _
    $region43: #{_qnetwork_forward_impl.1} parent=1 // pred_check_branch
      %330 = sbr.rel (0) target = $region45
    $region44: #{_qnetwork_forward_impl.1} parent=1 // pred_region
      _
    $region45: #{_qnetwork_forward_impl.1} parent=1 // pred_fallthru
      _
    %331 = vsyncpa [#allocation3], 1
    %332 = vsyncpa [#allocation5], 1

</llo_original>
